<compile_context>
chip_gen: v7x
topology: tpu7x:2x2x1
jax: 0.10.0
libtpu: 0.0.40
codegen_flags: <defaults>
</compile_context>

<pallas_src>
import jax
import jax.numpy as jnp
from jax.experimental import pallas as pl
from jax.experimental.pallas import tpu as pltpu


# ---------------------------------------------------------------------------
# Helpers
# ---------------------------------------------------------------------------
def _round_up(x, m):
    return (x + m - 1) // m * m


def _vmem_capacity_bytes():
    """Physical VMEM of the current TPU generation (conservative fallback = v7x 64 MiB)."""
    try:
        return int(pltpu.get_tpu_info().vmem_capacity_bytes)
    except Exception:
        return 64 << 20


def _vmem_limit_bytes(pipelined_bytes, resident_bytes, capacity):
    """2x buffers for every block (default pipelining) + ~25% headroom, <= 75% of VMEM."""
    need = 2 * (pipelined_bytes + resident_bytes)
    limit = int(need * 1.25) + (1 << 20)
    limit = max(limit, 16 << 20)
    limit = min(limit, int(0.75 * capacity))
    return int(limit)


def _pick_row_tile(m, requested, *, per_row_bytes, resident_bytes, capacity):
    """Pick a row-tile size.

    * Returns the full extent when m <= 8 (valid because block == full dim), otherwise a
      multiple of 8 that is <= m; the ragged last block is masked by Pallas, so the
      activations never need wrapper-side padding.
    * Caps the tile so 2x(row-dependent blocks) + 2x(resident blocks) stays under ~45% of
      physical VMEM (v7x = 64 MiB needs smaller tiles than v5e/v6e at 128 MiB).
    * Guarantees >= 2 grid steps when possible so both v7x TensorCores get work.
    """
    if m <= 8:
        return m
    budget = int(0.45 * capacity) - 2 * resident_bytes
    vmem_cap = max(8, budget // max(2 * per_row_bytes, 1))
    t = min(requested, vmem_cap, m)
    t = max(8, (t // 8) * 8)
    while t > 8 and pl.cdiv(m, t) < 2:  # ensure >= 2 steps for v7x megacore when possible
        t = max(8, ((t // 2) // 8) * 8)
    return t


# ---------------------------------------------------------------------------
# Kernels
# ---------------------------------------------------------------------------
def _prompt_kernel(item_ref, type_t_ref, out_ref):
    # item_ref: (1, tile_n, D), type_t_ref: (1, D, T_pad), out_ref: (1, tile_n, T_pad)
    # Plain row-major contraction: lowers straight to the MXU, f32 accumulation.
    s = jnp.dot(item_ref[0], type_t_ref[0], preferred_element_type=jnp.float32)
    out_ref[0] = s.astype(out_ref.dtype)


def _linear_kernel(x_ref, w_ref, b_ref, out_ref):
    # x_ref: (tile_m, D), w_ref: (D, T_pad), b_ref: (1, T_pad) f32, out_ref: (tile_m, T_pad)
    y = jnp.dot(x_ref[...], w_ref[...], preferred_element_type=jnp.float32)
    out_ref[...] = (y + b_ref[...]).astype(out_ref.dtype)


# ---------------------------------------------------------------------------
# Wrappers
# ---------------------------------------------------------------------------
def output_layer_prompt(item_reps, item_type_reps, *, tile_n=512, compute_dtype=None):
    """einsum('bnd,btd->bnt') on the MXU with a lane-dense (padded) output.

    compute_dtype=jnp.bfloat16 casts the matmul operands (f32 accumulation preserved).
    """
    B, N, D = item_reps.shape
    Bt, T, Dt = item_type_reps.shape
    assert B == Bt and D == Dt

    out_dtype = item_reps.dtype
    op_dtype = jnp.dtype(compute_dtype) if compute_dtype is not None else item_reps.dtype
    op_isz = jnp.dtype(op_dtype).itemsize
    out_isz = jnp.dtype(out_dtype).itemsize

    T_pad = _round_up(T, 128)

    x = item_reps.astype(op_dtype)
    # One-time transpose + pad of the small type tensor -> (B, D, T_pad); the kernel then
    # contracts last-dim/first-dim with no in-kernel relayout.
    type_t = jnp.transpose(item_type_reps, (0, 2, 1))          # (B, D, T)
    if T_pad != T:
        type_t = jnp.pad(type_t, ((0, 0), (0, 0), (0, T_pad - T)))
    type_t = type_t.astype(op_dtype)

    capacity = _vmem_capacity_bytes()
    tile_n = _pick_row_tile(
        N, tile_n,
        per_row_bytes=D * op_isz + T_pad * out_isz,
        resident_bytes=D * T_pad * op_isz,
        capacity=capacity,
    )
    n_tiles = pl.cdiv(N, tile_n)

    x_b = tile_n * D * op_isz
    t_b = D * T_pad * op_isz
    o_b = tile_n * T_pad * out_isz

    out = pl.pallas_call(
        _prompt_kernel,
        out_shape=jax.ShapeDtypeStruct((B, N, T_pad), out_dtype),
        grid_spec=pltpu.PrefetchScalarGridSpec(
            num_scalar_prefetch=0,
            grid=(B, n_tiles),
            in_specs=[
                pl.BlockSpec((1, tile_n, D), lambda b, i: (b, i, 0)),
                pl.BlockSpec((1, D, T_pad), lambda b, i: (b, 0, 0)),  # constant along i
            ],
            out_specs=pl.BlockSpec((1, tile_n, T_pad), lambda b, i: (b, i, 0)),
        ),
        compiler_params=pltpu.CompilerParams(
            dimension_semantics=("parallel", "parallel"),
            vmem_limit_bytes=_vmem_limit_bytes(x_b + o_b, t_b, capacity),
        ),
        cost_estimate=pl.CostEstimate(
            flops=2 * B * N * D * T_pad,
            transcendentals=0,
            bytes_accessed=B * N * D * op_isz + B * D * T_pad * op_isz + B * N * T_pad * out_isz,
        ),
    )(x, type_t)
    return out[:, :, :T]


def output_layer_linear(item_reps, weight, bias, *, tile_m=512, compute_dtype=None):
    """dropout(eval=identity) + nn.Linear(hidden, num_types): out = x @ W^T + b.

    Batch is collapsed into the matmul M dimension; T is padded to a multiple of 128 so
    stores are lane-dense; weight is pre-transposed once to (D, T_pad) and stays resident.
    """
    B, N, D = item_reps.shape
    T, Dw = weight.shape
    assert D == Dw

    out_dtype = item_reps.dtype
    op_dtype = jnp.dtype(compute_dtype) if compute_dtype is not None else item_reps.dtype
    op_isz = jnp.dtype(op_dtype).itemsize
    out_isz = jnp.dtype(out_dtype).itemsize

    M = B * N
    T_pad = _round_up(T, 128)

    x2d = item_reps.reshape(M, D).astype(op_dtype)                       # no row padding
    w_t = jnp.pad(weight.T, ((0, 0), (0, T_pad - T))).astype(op_dtype)   # (D, T_pad)
    b_p = jnp.pad(bias.astype(jnp.float32), (0, T_pad - T)).reshape(1, T_pad)

    capacity = _vmem_capacity_bytes()
    tile_m = _pick_row_tile(
        M, tile_m,
        per_row_bytes=D * op_isz + T_pad * out_isz,
        resident_bytes=D * T_pad * op_isz + T_pad * 4,
        capacity=capacity,
    )
    m_tiles = pl.cdiv(M, tile_m)

    x_b = tile_m * D * op_isz
    w_b = D * T_pad * op_isz
    b_b = T_pad * 4
    o_b = tile_m * T_pad * out_isz

    out = pl.pallas_call(
        _linear_kernel,
        out_shape=jax.ShapeDtypeStruct((M, T_pad), out_dtype),
        grid_spec=pltpu.PrefetchScalarGridSpec(
            num_scalar_prefetch=0,
            grid=(m_tiles,),
            in_specs=[
                pl.BlockSpec((tile_m, D), lambda i: (i, 0)),
                pl.BlockSpec((D, T_pad), lambda i: (0, 0)),   # weight resident across tiles
                pl.BlockSpec((1, T_pad), lambda i: (0, 0)),   # bias resident across tiles
            ],
            out_specs=pl.BlockSpec((tile_m, T_pad), lambda i: (i, 0)),
        ),
        compiler_params=pltpu.CompilerParams(
            dimension_semantics=("parallel",),
            vmem_limit_bytes=_vmem_limit_bytes(x_b + o_b, w_b + b_b, capacity),
        ),
        cost_estimate=pl.CostEstimate(
            flops=2 * M * D * T_pad,
            transcendentals=0,
            bytes_accessed=M * D * op_isz + D * T_pad * op_isz + T_pad * 4 + M * T_pad * out_isz,
        ),
    )(x2d, w_t, b_p)
    return out[:, :T].reshape(B, N, T)


# ---------------------------------------------------------------------------
# Main
# ---------------------------------------------------------------------------
if __name__ == "__main__":
    key = jax.random.PRNGKey(0)
    k1, k2, k3, k4 = jax.random.split(key, 4)

    batch, num_items, hidden, num_types = 2, 8, 32, 4

    item_reps = jax.random.normal(k1, (batch, num_items, hidden), dtype=jnp.float32)
    item_type_reps = jax.random.normal(k2, (batch, num_types, hidden), dtype=jnp.float32)

    # Deterministic nn.Linear-style params (kaiming-uniform-ish bounds).
    bound_w = 1.0 / jnp.sqrt(hidden)
    weight = jax.random.uniform(k3, (num_types, hidden), minval=-bound_w, maxval=bound_w,
                                dtype=jnp.float32)
    bias = jax.random.uniform(k4, (num_types,), minval=-bound_w, maxval=bound_w,
                              dtype=jnp.float32)

    # --- Mode 1: use_prompt=True (f32 operands, strict check) ---
    out_prompt = jax.block_until_ready(output_layer_prompt(item_reps, item_type_reps))
    ref_prompt = jnp.einsum('bnd,btd->bnt', item_reps, item_type_reps)
    assert out_prompt.shape == (batch, num_items, num_types)
    assert jnp.allclose(out_prompt, ref_prompt, atol=1e-5, rtol=1e-5)

    # --- Mode 2: use_prompt=False (eval-mode dropout = identity), f32 strict ---
    out_linear = jax.block_until_ready(output_layer_linear(item_reps, weight, bias))
    ref_linear = jnp.einsum('bnd,td->bnt', item_reps, weight) + bias[None, None, :]
    assert out_linear.shape == (batch, num_items, num_types)
    assert jnp.allclose(out_linear, ref_linear, atol=1e-5, rtol=1e-5)

    # --- bf16 fast path (MXU-native operands, f32 accumulation) ---
    out_prompt_bf16 = jax.block_until_ready(
        output_layer_prompt(item_reps, item_type_reps, compute_dtype=jnp.bfloat16))
    ref_prompt_bf16 = jnp.einsum(
        'bnd,btd->bnt',
        item_reps.astype(jnp.bfloat16).astype(jnp.float32),
        item_type_reps.astype(jnp.bfloat16).astype(jnp.float32))
    assert jnp.allclose(out_prompt_bf16.astype(jnp.float32), ref_prompt_bf16,
                        atol=2e-3, rtol=2e-3)

    out_linear_bf16 = jax.block_until_ready(
        output_layer_linear(item_reps, weight, bias, compute_dtype=jnp.bfloat16))
    ref_linear_bf16 = jnp.einsum(
        'bnd,td->bnt',
        item_reps.astype(jnp.bfloat16).astype(jnp.float32),
        weight.astype(jnp.bfloat16).astype(jnp.float32)) + bias[None, None, :]
    assert jnp.allclose(out_linear_bf16.astype(jnp.float32), ref_linear_bf16,
                        atol=2e-3, rtol=2e-3)

    print("KERNEL_OK")
</pallas_src>

<mosaic_0001>
module attributes {stable_mosaic.version = 11 : i64} {
  func.func @_prompt_kernel(%arg0: i32, %arg1: i32, %arg2: memref<1x8x32xf32, #tpu.memory_space<vmem>>, %arg3: memref<1x32x128xf32, #tpu.memory_space<vmem>>, %arg4: memref<1x8x128xf32, #tpu.memory_space<vmem>>) attributes {dimension_semantics = [#tpu.dimension_semantics<parallel>, #tpu.dimension_semantics<parallel>], iteration_bounds = array<i64: 2, 1>, scalar_prefetch = 0 : i64, scratch_operands = 0 : i64, tpu.core_type = #tpu.core_type<tc>, window_params = [{transform_indices = @transform_0, window_bounds = array<i64: 1, 8, 32>}, {transform_indices = @transform_1, window_bounds = array<i64: 1, 32, 128>}, {transform_indices = @transform_2, window_bounds = array<i64: 1, 8, 128>}]} {
    %c0 = arith.constant 0 : index
    %c0_0 = arith.constant 0 : index
    %c0_1 = arith.constant 0 : index
    %0 = vector.load %arg2[%c0, %c0_0, %c0_1] : memref<1x8x32xf32, #tpu.memory_space<vmem>>, vector<1x8x32xf32>
    %1 = vector.shape_cast %0 : vector<1x8x32xf32> to vector<8x32xf32>
    %c0_2 = arith.constant 0 : index
    %c0_3 = arith.constant 0 : index
    %c0_4 = arith.constant 0 : index
    %2 = vector.load %arg3[%c0_2, %c0_3, %c0_4] : memref<1x32x128xf32, #tpu.memory_space<vmem>>, vector<1x32x128xf32>
    %3 = vector.shape_cast %2 : vector<1x32x128xf32> to vector<32x128xf32>
    %cst = arith.constant dense<0.000000e+00> : vector<8x128xf32>
    %4 = tpu.matmul %1, %3, %cst {dimension_numbers = #tpu.dot_dimension_numbers<[1], [0], [0], [1], [0, 0, 1, 1], [], []>} : vector<8x32xf32>, vector<32x128xf32>, vector<8x128xf32> -> vector<8x128xf32>
    %c0_5 = arith.constant 0 : index
    %c0_6 = arith.constant 0 : index
    %c0_7 = arith.constant 0 : index
    %5 = vector.load %arg4[%c0_5, %c0_6, %c0_7] : memref<1x8x128xf32, #tpu.memory_space<vmem>>, vector<1x8x128xf32>
    %6 = vector.shape_cast %5 : vector<1x8x128xf32> to vector<8x128xf32>
    %7 = vector.shape_cast %4 : vector<8x128xf32> to vector<1x8x128xf32>
    tpu.vector_store %arg4[%c0_5, %c0_6, %c0_7], %7 {strides = array<i32>} : memref<1x8x128xf32, #tpu.memory_space<vmem>>, vector<1x8x128xf32>,
    return
  }
  func.func @transform_0(%arg0: i32, %arg1: i32) -> (i32, i32, i32) {
    %c0_i32 = arith.constant 0 : i32
    %c0_i32_0 = arith.constant 0 : i32
    return %arg0, %arg1, %c0_i32 : i32, i32, i32
  }
  func.func @transform_1(%arg0: i32, %arg1: i32) -> (i32, i32, i32) {
    %c0_i32 = arith.constant 0 : i32
    %c0_i32_0 = arith.constant 0 : i32
    %c0_i32_1 = arith.constant 0 : i32
    return %arg0, %c0_i32, %c0_i32_0 : i32, i32, i32
  }
  func.func @transform_2(%arg0: i32, %arg1: i32) -> (i32, i32, i32) {
    %c0_i32 = arith.constant 0 : i32
    %c0_i32_0 = arith.constant 0 : i32
    return %arg0, %arg1, %c0_i32 : i32, i32, i32
  }
}

</mosaic_0001>

<llo_original>
// kernel: tpu_custom_call.1
$region0: #{tpu_custom_call.1}
  #allocation0 [shape = 'u32[]', space=smem, size = 0x4, offset = 0x4, fixed_abs, tag = 'smem constant byte address 0x4 - core index']
  #allocation1 [shape = 'u32[144,128]{1,0:T(1,128)}', space=vmem, size = 0x12000, scoped, tag = 'internal scratch']
  %s0 = inlined_call_operand.hbm [shape: f32[2,8,32], index: 0, kind: input, shape index: {}]
  %s1 = inlined_call_operand.hbm [shape: f32[2,32,128], index: 1, kind: input, shape index: {}]
  %s2 = inlined_call_operand.hbm [shape: f32[2,8,128], index: 2, kind: output, shape index: {}]
  %s3 = sld [smem:[#allocation0]]
  $region49: #{tpu_custom_call.1} parent=0
    _
  %s5 = ssub.s32 1, %s3
  %s6 = scalar_select 0, %s5, %s3
  $region1: #{tpu_custom_call.1} parent=0
    #allocation2 [shape = 'u8[8192]{0}', space=vmem, size = 0x2000, scoped, tag = 'input window, operand 0']
    #allocation3 [shape = 's32[2]{0}', space=sflag, size = 0x8, scoped, tag = 'scoped memory for tpu_custom_call.1']
    #allocation4 [shape = 's32[2]{0}', space=sflag, size = 0x8, scoped, tag = 'scoped memory for tpu_custom_call.1']
    #allocation5 [shape = 'u8[32768]{0}', space=vmem, size = 0x8000, scoped, tag = 'input window, operand 1']
    #allocation6 [shape = 's32[2]{0}', space=sflag, size = 0x8, scoped, tag = 'scoped memory for tpu_custom_call.1']
    #allocation7 [shape = 'u8[8192]{0}', space=vmem, size = 0x2000, scoped, tag = 'output window, operand 0']
    %7 = vsyncpa [#allocation3], 0
    %s8 = scalar_lea.sflag [#allocation3], 1
    %9 = vsyncpa %s8, 0
    %10 = vsyncpa [#allocation6], 0
    %s11 = scalar_lea.sflag [#allocation6], 1
    %12 = vsyncpa %s11, 0
    %13 = vsyncpa [#allocation4], 0
    %s14 = scalar_lea.sflag [#allocation4], 1
    %15 = vsyncpa %s14, 0
    loop: start=0, step=1, limit=4
    $region2: #{tpu_custom_call.1} parent=1 // loop_pre_header
      _
    $region3: #{tpu_custom_call.1} parent=1 // loop_header
      %s17 = sphi 0, %s21
      %p18 = scmp.ge.s32.totalorder %s17, 4
      %s24 = sphi 0, %s36
      %s25 = sphi 0, %s32
      %s26 = sphi 0, %s24
      %s27 = sphi 0, %s25
      %s28 = sphi 0, %s26
      %s29 = sphi 0, %s27
      %s41 = sphi 0, %s43
      %s44 = sphi 0, %s41
      %s45 = sphi 0, %s44
      %s61 = sphi 0, %s45
      %s67 = sphi 0, %s69
      %s70 = sphi 0, %s67
      %s71 = sphi 0, %s70
      %s87 = sphi 0, %s71
      %s95 = sphi 0, %s97
      %s98 = sphi 0, %s95
      %s99 = sphi 0, %s98
      %s115 = sphi 0, %s99
    $region4: #{tpu_custom_call.1} parent=1 // loop_header_branch
      %20 = sbr.rel (%p18) target = $region8
    $region5: #{tpu_custom_call.1} parent=1 // loop_body
      %s22 = ssub.s32 %s17, 1
      %s23 = ssub.s32 %s17, 2
      %s30 = sadd.s32 1, %s25
      %p31 = scmp.ge.s32.totalorder %s30, 1
      %s32 = scalar_select %p31, 0, %s30
      %s33 = sadd.s32 1, %s24
      %s34 = scalar_select %p31, %s33, %s24
      %p35 = scmp.ge.s32.totalorder %s34, 2
      %s36 = scalar_select %p35, 0, %s34
      %s37 = ssub.s32 %s24, %s36
      %s38 = ssub.s32 %s25, %s32
      %s39 = sor.u32 %s37, %s38
      %p40 = scmp.eq.s32.totalorder %s39, 0
      %s42 = sadd.s32 %s41, 1
      %s43 = scalar_select %p40, %s41, %s42
      %p46 = pneg %p40
      %p47 = scmp.eq.s32.totalorder %s17, 1
      %p48 = por %p46, %p47
      %p49 = scmp.ne.s32.totalorder %s41, %s44
      %p50 = scmp.eq.s32.totalorder %s17, 0
      %p51 = por %p49, %p50
      %p52 = scmp.ne.s32.totalorder %s41, %s44
      %p53 = scmp.eq.s32.totalorder %s22, 1
      %p54 = por %p52, %p53
      %p55 = scmp.ne.s32.totalorder %s44, %s45
      %p56 = scmp.eq.s32.totalorder %s22, 0
      %p57 = por %p55, %p56
      %p58 = scmp.ne.s32.totalorder %s44, %s45
      %p59 = scmp.eq.s32.totalorder %s23, 1
      %p60 = por %p58, %p59
      %p62 = scmp.ne.s32.totalorder %s45, %s61
      %p63 = scmp.eq.s32.totalorder %s23, 0
      %p64 = por %p62, %p63
      %s65 = ssub.s32 %s24, %s36
      %p66 = scmp.eq.s32.totalorder %s65, 0
      %s68 = sadd.s32 %s67, 1
      %s69 = scalar_select %p66, %s67, %s68
      %p72 = pneg %p66
      %p73 = scmp.eq.s32.totalorder %s17, 1
      %p74 = por %p72, %p73
      %p75 = scmp.ne.s32.totalorder %s67, %s70
      %p76 = scmp.eq.s32.totalorder %s17, 0
      %p77 = por %p75, %p76
      %p78 = scmp.ne.s32.totalorder %s67, %s70
      %p79 = scmp.eq.s32.totalorder %s22, 1
      %p80 = por %p78, %p79
      %p81 = scmp.ne.s32.totalorder %s70, %s71
      %p82 = scmp.eq.s32.totalorder %s22, 0
      %p83 = por %p81, %p82
      %p84 = scmp.ne.s32.totalorder %s70, %s71
      %p85 = scmp.eq.s32.totalorder %s23, 1
      %p86 = por %p84, %p85
      %p88 = scmp.ne.s32.totalorder %s71, %s87
      %p89 = scmp.eq.s32.totalorder %s23, 0
      %p90 = por %p88, %p89
      %s91 = ssub.s32 %s24, %s36
      %s92 = ssub.s32 %s25, %s32
      %s93 = sor.u32 %s91, %s92
      %p94 = scmp.eq.s32.totalorder %s93, 0
      %s96 = sadd.s32 %s95, 1
      %s97 = scalar_select %p94, %s95, %s96
      %p100 = pneg %p94
      %p101 = scmp.eq.s32.totalorder %s17, 1
      %p102 = por %p100, %p101
      %p103 = scmp.ne.s32.totalorder %s95, %s98
      %p104 = scmp.eq.s32.totalorder %s17, 0
      %p105 = por %p103, %p104
      %p106 = scmp.ne.s32.totalorder %s95, %s98
      %p107 = scmp.eq.s32.totalorder %s22, 1
      %p108 = por %p106, %p107
      %p109 = scmp.ne.s32.totalorder %s98, %s99
      %p110 = scmp.eq.s32.totalorder %s22, 0
      %p111 = por %p109, %p110
      %p112 = scmp.ne.s32.totalorder %s98, %s99
      %p113 = scmp.eq.s32.totalorder %s23, 1
      %p114 = por %p112, %p113
      %p116 = scmp.ne.s32.totalorder %s99, %s115
      %p117 = scmp.eq.s32.totalorder %s23, 0
      %p118 = por %p116, %p117
      %p119 = scmp.le.s32.totalorder 1, %s17
      %p120 = scmp.lt.s32.totalorder %s17, 3
      %p121 = pnand %p119, %p120
      %p122 = pneg %p121
      // Predicated region
      $region9: #{tpu_custom_call.1} parent=5 // pred_check
        _
      $region10: #{tpu_custom_call.1} parent=5 // pred_check_branch
        %124 = sbr.rel (%p121) target = $region12
      $region11: #{tpu_custom_call.1} parent=5 // pred_region
        %s125 = ssub.s32 %s17, 1
      $region12: #{tpu_custom_call.1} parent=5 // pred_fallthru
        _
      %p126 = scmp.lt.s32.totalorder %s17, 2
      // Predicated region
      $region13: #{tpu_custom_call.1} parent=5 // pred_check
        %p127 = pneg %p126
      $region14: #{tpu_custom_call.1} parent=5 // pred_check_branch
        %129 = sbr.rel (%p127) target = $region16
      $region15: #{tpu_custom_call.1} parent=5 // pred_region
        // Predicated region
        $region17: #{tpu_custom_call.1} parent=15 // pred_check
          %p130 = pneg %p51
        $region18: #{tpu_custom_call.1} parent=15 // pred_check_branch
          %132 = sbr.rel (%p130) target = $region20
        $region19: #{tpu_custom_call.1} parent=15 // pred_region
          %s133 = sand.u32 %s41, 1
          %s134 = scalar_lea.sflag [#allocation3], %s133
          %s135 = sand.u32 %s41, 1
          %s136 = smul.addr %s135, 8
          %s137 = scalar_lea.vmem [#allocation2], %s136
          %s139 = ssub.s32 128, 128
          %140 = vsyncadd %s134, %s139
          %s141 = sadd.s32 %s25, %s24
          %s142 = smul.addr %s141, 128
          %s143 = scalar_lea.hbm %s0, %s142
          %s145 = sshll.u32 %s137, 4
          %s146 = int_to_ptr.vmem [resolvable:$true] %s145
          %148 = dma.hbm_to_vmem [thread:$0]  %s143, 128, %s146, %s134
        $region20: #{tpu_custom_call.1} parent=15 // pred_fallthru
          _
        // Predicated region
        $region21: #{tpu_custom_call.1} parent=15 // pred_check
          %p149 = pneg %p77
        $region22: #{tpu_custom_call.1} parent=15 // pred_check_branch
          %151 = sbr.rel (%p149) target = $region24
        $region23: #{tpu_custom_call.1} parent=15 // pred_region
          %s152 = sand.u32 %s67, 1
          %s153 = scalar_lea.sflag [#allocation6], %s152
          %s154 = sand.u32 %s67, 1
          %s155 = smul.addr %s154, 32
          %s156 = scalar_lea.vmem [#allocation5], %s155
          %s158 = ssub.s32 512, 512
          %159 = vsyncadd %s153, %s158
          %s160 = smul.addr %s24, 4
          %s161 = smul.addr %s160, 128
          %s162 = scalar_lea.hbm %s1, %s161
          %s163 = sshll.u32 %s156, 4
          %s164 = int_to_ptr.vmem [resolvable:$true] %s163
          %169 = dma.hbm_to_vmem [thread:$0]  %s162, 512, %s164, %s153, 128, 128, 8
        $region24: #{tpu_custom_call.1} parent=15 // pred_fallthru
          _
      $region16: #{tpu_custom_call.1} parent=5 // pred_fallthru
        _
      %p170 = scmp.le.s32.totalorder 1, %s17
      %p171 = scmp.lt.s32.totalorder %s17, 3
      %p172 = pnand %p170, %p171
      %p173 = pneg %p172
      // Predicated region
      $region25: #{tpu_custom_call.1} parent=5 // pred_check
        _
      $region26: #{tpu_custom_call.1} parent=5 // pred_check_branch
        %175 = sbr.rel (%p172) target = $region28
      $region27: #{tpu_custom_call.1} parent=5 // pred_region
        %s176 = ssub.s32 %s17, 1
        %s177 = sand.u32 %s44, 1
        %s178 = scalar_lea.sflag [#allocation3], %s177
        %s179 = sand.u32 %s44, 1
        %s180 = smul.addr %s179, 8
        %s181 = scalar_lea.vmem [#allocation2], %s180
        // Predicated region
        $region29: #{tpu_custom_call.1} parent=27 // pred_check
          %p182 = pneg %p57
        $region30: #{tpu_custom_call.1} parent=27 // pred_check_branch
          %184 = sbr.rel (%p182) target = $region32
        $region31: #{tpu_custom_call.1} parent=27 // pred_region
          %185 = dma.done %s178, 128
        $region32: #{tpu_custom_call.1} parent=27 // pred_fallthru
          _
        %s186 = sand.u32 %s70, 1
        %s187 = scalar_lea.sflag [#allocation6], %s186
        %s188 = sand.u32 %s70, 1
        %s189 = smul.addr %s188, 32
        %s190 = scalar_lea.vmem [#allocation5], %s189
        // Predicated region
        $region33: #{tpu_custom_call.1} parent=27 // pred_check
          %p191 = pneg %p83
        $region34: #{tpu_custom_call.1} parent=27 // pred_check_branch
          %193 = sbr.rel (%p191) target = $region36
        $region35: #{tpu_custom_call.1} parent=27 // pred_region
          %194 = dma.done %s187, 512
        $region36: #{tpu_custom_call.1} parent=27 // pred_fallthru
          _
        %s195 = sand.u32 %s44, 1
        %s196 = scalar_lea.sflag [#allocation3], %s195
        %s197 = sand.u32 %s44, 1
        %s198 = smul.addr %s197, 8
        %s199 = scalar_lea.vmem [#allocation2], %s198
        %p200 = pneg %p57
        %p201 = pneg %p54
        %s202 = sand.u32 %s70, 1
        %s203 = scalar_lea.sflag [#allocation6], %s202
        %s204 = sand.u32 %s70, 1
        %s205 = smul.addr %s204, 32
        %s206 = scalar_lea.vmem [#allocation5], %s205
        %p207 = pneg %p83
        %p208 = pneg %p80
        %p209 = pneg %p111
        %p210 = pneg %p108
        %s211 = sand.u32 %s98, 1
        %s212 = scalar_lea.sflag [#allocation4], %s211
        %s213 = sand.u32 %s98, 1
        %s214 = smul.addr %s213, 8
        %s215 = scalar_lea.vmem [#allocation7], %s214
        %v216 = vld [vmem:[%s181] sm:$0xff]
        %v217 = vld [vmem:[%s190] sm:$0xff]
        %v218 = vld [vmem:[%s190 + $0x8] sm:$0xff]
        %v219 = vld [vmem:[%s190 + $0x10] sm:$0xff]
        %v220 = vld [vmem:[%s190 + $0x18] sm:$0xff]
        %vm221 = vcmask 261120
        %v223 = vsel %vm221, %v216, 0
        %225 = vmatprep.subr.mxu0 0.0
        %226 = vmatpush1.msra.mxu0 %v217
        %227 = vmatprep.subr.mxu0 0.0
        %228 = vmatpush1.msra.mxu0 %v218
        %229 = vmatprep.subr.mxu0 0.0
        %230 = vmatpush1.msra.mxu0 %v219
        %231 = vmatprep.subr.mxu0 0.0
        %232 = vmatpush1.msra.mxu0 %v220
        %233 = vmatprep.subr.mxu0 0.0
        %234 = vmatpush1.msra.mxu0 0.0
        %235 = vmatprep.subr.mxu0 0.0
        %236 = vmatpush1.msra.mxu0 0.0
        %237 = vmatprep.subr.mxu0 0.0
        %238 = vmatpush1.msra.mxu0 0.0
        %239 = vmatprep.subr.mxu0 0.0
        %240 = vmatpush1.msra.mxu0 0.0
        %241 = vmatprep.subr.mxu0 0.0
        %242 = vmatpush1.msra.mxu0 0.0
        %243 = vmatprep.subr.mxu0 0.0
        %244 = vmatpush1.msra.mxu0 0.0
        %245 = vmatprep.subr.mxu0 0.0
        %246 = vmatpush1.msra.mxu0 0.0
        %247 = vmatprep.subr.mxu0 0.0
        %248 = vmatpush1.msra.mxu0 0.0
        %249 = vmatprep.subr.mxu0 0.0
        %250 = vmatpush1.msra.mxu0 0.0
        %251 = vmatprep.subr.mxu0 0.0
        %252 = vmatpush1.msra.mxu0 0.0
        %253 = vmatprep.subr.mxu0 0.0
        %254 = vmatpush1.msra.mxu0 0.0
        %255 = vmatprep.subr.mxu0 0.0
        %256 = vmatpush1.msra.mxu0 0.0
        %257 = vmatprep.subr.mxu0 0.0
        %258 = vmatpush1.msra.mxu0 0.0
        %259 = vmatprep.subr.mxu0 0.0
        %260 = vmatpush1.msra.mxu0 0.0
        %261 = vmatprep.subr.mxu0 0.0
        %262 = vmatpush1.msra.mxu0 0.0
        %263 = vmatprep.subr.mxu0 0.0
        %264 = vmatpush1.msra.mxu0 0.0
        %265 = vmatprep.subr.mxu0 0.0
        %266 = vmatpush1.msra.mxu0 0.0
        %267 = vmatprep.subr.mxu0 0.0
        %268 = vmatpush1.msra.mxu0 0.0
        %269 = vmatprep.subr.mxu0 0.0
        %270 = vmatpush1.msra.mxu0 0.0
        %271 = vmatprep.subr.mxu0 0.0
        %272 = vmatpush1.msra.mxu0 0.0
        %273 = vmatprep.subr.mxu0 0.0
        %274 = vmatpush1.msra.mxu0 0.0
        %275 = vmatprep.subr.mxu0 0.0
        %276 = vmatpush1.msra.mxu0 0.0
        %277 = vmatprep.subr.mxu0 0.0
        %278 = vmatpush1.msra.mxu0 0.0
        %279 = vmatprep.subr.mxu0 0.0
        %280 = vmatpush1.msra.mxu0 0.0
        %281 = vmatprep.subr.mxu0 0.0
        %282 = vmatpush1.msra.mxu0 0.0
        %283 = vmatprep.subr.mxu0 0.0
        %284 = vmatpush1.msra.mxu0 0.0
        %285 = vmatprep.subr.mxu0 0.0
        %286 = vmatpush1.msra.mxu0 0.0
        %287 = vmatprep.subr.mxu0 0.0
        %288 = vmatpush1.msra.mxu0 0.0
        %289 = vmatprep.mubr.f32.mxu0 0.0
        %290 = vmatmul.mubr.f32.gmra.mrb[0].mxu0 %v223
        %v291 = vpop.f32.mrb[0].mxu0
        %v292 = vadd.f32 0.0, %v291
        %v293 = vpop.f32.mrb[0].mxu0
        %294 = vdwg.mxu0
        %295 = vst [vmem:[%s215] sm:$0xff] %v292
        %s296 = sand.u32 %s98, 1
        %s297 = scalar_lea.sflag [#allocation4], %s296
        %s298 = sand.u32 %s98, 1
        %s299 = smul.addr %s298, 8
        %s300 = scalar_lea.vmem [#allocation7], %s299
        // Predicated region
        $region37: #{tpu_custom_call.1} parent=27 // pred_check
          %p301 = pneg %p108
        $region38: #{tpu_custom_call.1} parent=27 // pred_check_branch
          %303 = sbr.rel (%p301) target = $region40
        $region39: #{tpu_custom_call.1} parent=27 // pred_region
          %s305 = ssub.s32 128, 128
          %306 = vsyncadd %s297, %s305
          %s307 = sadd.s32 %s27, %s26
          %s308 = smul.addr %s307, 128
          %s309 = scalar_lea.hbm %s2, %s308
          %s311 = sshll.u32 %s300, 4
          %s312 = int_to_ptr.vmem [resolvable:$true] %s311
          %314 = dma.vmem_to_hbm [thread:$0]  %s312, 128, %s309, %s297
        $region40: #{tpu_custom_call.1} parent=27 // pred_fallthru
          _
      $region28: #{tpu_custom_call.1} parent=5 // pred_fallthru
        _
      %p315 = scmp.le.s32.totalorder 2, %s17
      // Predicated region
      $region41: #{tpu_custom_call.1} parent=5 // pred_check
        %p316 = pneg %p315
      $region42: #{tpu_custom_call.1} parent=5 // pred_check_branch
        %318 = sbr.rel (%p316) target = $region44
      $region43: #{tpu_custom_call.1} parent=5 // pred_region
        %s319 = ssub.s32 %s17, 2
        // Predicated region
        $region45: #{tpu_custom_call.1} parent=43 // pred_check
          %p320 = pneg %p114
        $region46: #{tpu_custom_call.1} parent=43 // pred_check_branch
          %322 = sbr.rel (%p320) target = $region48
        $region47: #{tpu_custom_call.1} parent=43 // pred_region
          %s323 = sand.u32 %s99, 1
          %s324 = scalar_lea.sflag [#allocation4], %s323
          %s325 = sand.u32 %s99, 1
          %s326 = smul.addr %s325, 8
          %s327 = scalar_lea.vmem [#allocation7], %s326
          %328 = dma.done %s324, 128
        $region48: #{tpu_custom_call.1} parent=43 // pred_fallthru
          _
      $region44: #{tpu_custom_call.1} parent=5 // pred_fallthru
        _
    $region6: #{tpu_custom_call.1} parent=1 // loop_footer
      %s21 = sadd.s32 1, %s17
    $region7: #{tpu_custom_call.1} parent=1 // loop_footer_branch
      %16 = sbr.rel target = $region3
    $region8: #{tpu_custom_call.1} parent=1 // loop_exit
      _
    %329 = vsyncpa [#allocation3], 1
    %s330 = scalar_lea.sflag [#allocation3], 1
    %331 = vsyncpa %s330, 1
    %332 = vsyncpa [#allocation6], 1
    %s333 = scalar_lea.sflag [#allocation6], 1
    %334 = vsyncpa %s333, 1
    %335 = vsyncpa [#allocation4], 1
    %s336 = scalar_lea.sflag [#allocation4], 1
    %337 = vsyncpa %s336, 1

</llo_original>
